<compile_context>
chip_gen: v7x
topology: tpu7x:2x2x1
jax: 0.10.0
libtpu: 0.0.40
codegen_flags: <defaults>
</compile_context>

<pallas_src>
import functools

import jax
import jax.numpy as jnp
from jax.experimental import pallas as pl
from jax.experimental.pallas import tpu as pltpu


def _round_up(a, b):
    return (a + b - 1) // b * b


def _alarmnet_kernel(xt_ref, w_ref, p_ref, o_ref, *, f_pad, h1, h2, h3):
    """Full MLP forward for one tile of batch columns (everything in VMEM).

    xt_ref : (f_pad, tile_n)        compute dtype -- x^T, batch on the lane axis
    w_ref  : (h1+h2+h3, w_cols)     compute dtype -- [W1^T ; W2^T ; W3^T], zero-padded
    p_ref  : (prow, 128) f32                      -- cols 0..2 = b1,b2,b3; [0,3]=b4; col 4 = w4
    o_ref  : (1, tile_n) f32                      -- lane-dense sigmoid output
    """
    xt = xt_ref[...]                               # (f_pad, tile_n)
    cd = xt.dtype

    w1t = w_ref[0:h1, 0:f_pad]                     # (h1, f_pad)
    w2t = w_ref[h1:h1 + h2, 0:h1]                  # (h2, h1)
    w3t = w_ref[h1 + h2:h1 + h2 + h3, 0:h2]        # (h3, h2)
    b1 = p_ref[0:h1, 0:1]                          # (h1, 1) f32
    b2 = p_ref[0:h2, 1:2]                          # (h2, 1)
    b3 = p_ref[0:h3, 2:3]                          # (h3, 1)
    b4 = p_ref[0:1, 3:4]                           # (1, 1)
    w4 = p_ref[0:h3, 4:5]                          # (h3, 1) f32

    # Linear(F, 64) + ReLU     -> (h1, tile_n); f32 accumulate, f32 bias/ReLU.
    a = jnp.dot(w1t, xt, preferred_element_type=jnp.float32) + b1
    a = jnp.maximum(a, 0.0).astype(cd)
    # Linear(64, 32) + ReLU    -> (h2, tile_n)
    a = jnp.dot(w2t, a, preferred_element_type=jnp.float32) + b2
    a = jnp.maximum(a, 0.0).astype(cd)
    # Linear(32, 16) + ReLU    -> (h3, tile_n); keep f32 for the output layer.
    a = jnp.dot(w3t, a, preferred_element_type=jnp.float32) + b3
    a = jnp.maximum(a, 0.0)                        # f32

    # Linear(16, 1) + Sigmoid, all in f32: broadcast-mul + sublane reduce.
    z = jnp.sum(w4 * a, axis=0, keepdims=True) + b4        # (1, tile_n) f32
    sig = pl.reciprocal(1.0 + jnp.exp(-z), approx=False)   # exp on EUP; exact recip
    o_ref[...] = sig.astype(o_ref.dtype)


def _pack_params(params, f_pad, compute_dtype):
    """Pack [W1^T;W2^T;W3^T] into one zero-padded slab and biases + w4 into an f32 slab."""
    (w1, b1), (w2, b2), (w3, b3), (w4, b4) = params
    F, H1 = w1.shape
    H2 = w2.shape[1]
    H3 = w3.shape[1]
    assert w4.shape == (H3, 1)

    w_cols = _round_up(max(f_pad, H1, H2, 128), 128)
    rows = _round_up(H1 + H2 + H3, 16)
    wslab = jnp.zeros((rows, w_cols), jnp.float32)
    wslab = wslab.at[:H1, :F].set(w1.T)
    wslab = wslab.at[H1:H1 + H2, :H1].set(w2.T)
    wslab = wslab.at[H1 + H2:H1 + H2 + H3, :H2].set(w3.T)
    wslab = wslab.astype(compute_dtype)

    prow = _round_up(max(H1, H2, H3, 8), 8)
    pslab = jnp.zeros((prow, 128), jnp.float32)
    pslab = pslab.at[:H1, 0].set(b1.reshape(-1))
    pslab = pslab.at[:H2, 1].set(b2.reshape(-1))
    pslab = pslab.at[:H3, 2].set(b3.reshape(-1))
    pslab = pslab.at[0, 3].set(b4.reshape(-1)[0])
    pslab = pslab.at[:H3, 4].set(w4.reshape(-1))
    return wslab, pslab


def alarmnet_forward(x, params, *, tile_n=None, compute_dtype=jnp.bfloat16):
    """x: (N, F) float32. params: list of (W (in,out), b (1,out)) per layer (4 layers)."""
    assert len(params) == 4, "kernel is specialized to 3 hidden layers + output layer"
    N, F = x.shape
    h1 = params[0][0].shape[1]
    h2 = params[1][0].shape[1]
    h3 = params[2][0].shape[1]
    f_pad = _round_up(max(F, 1), 16)               # bf16 sublane alignment for x^T / W1^T

    if tile_n is None:
        n128 = _round_up(max(N, 1), 128)
        if n128 <= 128:
            tile_n = 128
        else:
            # Transposed-layout VMEM per tile at 4096 cols is ~3 MiB -> safe on
            # v5e (16 MiB scoped), v6e/v7x (32 MiB scoped). Keep >=2 grid steps
            # and an EVEN step count so 2 TensorCores (v7x) stay balanced.
            cap = 4096
            steps = max(2, pl.cdiv(n128, cap))
            if steps % 2:
                steps += 1
            tile_n = min(cap, _round_up(pl.cdiv(n128, steps), 128))
    assert tile_n % 128 == 0, "tile_n must be a multiple of 128 (lane-dense batch axis)"

    n_pad = _round_up(N, tile_n)
    grid = (n_pad // tile_n,)

    # Pad + cast + transpose once (single fused XLA copy); batch lands on lanes.
    xt = jnp.pad(x, ((0, n_pad - N), (0, f_pad - F))).astype(compute_dtype).T

    wslab, pslab = _pack_params(params, f_pad, compute_dtype)

    kernel = functools.partial(_alarmnet_kernel, f_pad=f_pad, h1=h1, h2=h2, h3=h3)

    out = pl.pallas_call(
        kernel,
        out_shape=jax.ShapeDtypeStruct((1, n_pad), jnp.float32),
        grid_spec=pltpu.PrefetchScalarGridSpec(
            num_scalar_prefetch=0,
            grid=grid,
            in_specs=[
                pl.BlockSpec((f_pad, tile_n), lambda i: (0, i)),   # lane-dense x^T tile
                pl.BlockSpec(wslab.shape, lambda i: (0, 0)),       # grid-invariant weights
                pl.BlockSpec(pslab.shape, lambda i: (0, 0)),       # grid-invariant biases/w4
            ],
            out_specs=pl.BlockSpec((1, tile_n), lambda i: (0, i)),  # lane-dense output row
        ),
        compiler_params=pltpu.CompilerParams(
            dimension_semantics=("parallel",)),
    )(xt, wslab, pslab)

    return out[0, :N].reshape(N, 1)


def init_params(key, num_features, hidden_layers=(64, 32, 16)):
    """nn.Linear-style init (uniform +/- 1/sqrt(fan_in)); W stored as (in, out) = W_torch.T."""
    dims = [num_features, *hidden_layers, 1]
    params = []
    for i in range(len(dims) - 1):
        fan_in, fan_out = dims[i], dims[i + 1]
        key, kw, kb = jax.random.split(key, 3)
        bound = 1.0 / jnp.sqrt(jnp.float32(fan_in))
        w = jax.random.uniform(kw, (fan_in, fan_out), jnp.float32, -bound, bound)
        b = jax.random.uniform(kb, (1, fan_out), jnp.float32, -bound, bound)
        params.append((w, b))
    return params


def reference_forward(x, params):
    """Pure-f32 JAX reference for the module's forward pass."""
    (w1, b1), (w2, b2), (w3, b3), (w4, b4) = params
    h = jnp.maximum(jnp.dot(x, w1, preferred_element_type=jnp.float32) + b1, 0.0)
    h = jnp.maximum(jnp.dot(h, w2, preferred_element_type=jnp.float32) + b2, 0.0)
    h = jnp.maximum(jnp.dot(h, w3, preferred_element_type=jnp.float32) + b3, 0.0)
    z = jnp.dot(h, w4, preferred_element_type=jnp.float32) + b4
    return jax.nn.sigmoid(z)


def reference_forward_mixed(x, params, compute_dtype=jnp.bfloat16):
    """Mirrors the kernel's dtype handling: bf16 operands for the three hidden
    matmuls (f32 accumulate / bias / ReLU), full-f32 output layer + sigmoid."""
    (w1, b1), (w2, b2), (w3, b3), (w4, b4) = params
    cd = compute_dtype
    h = jnp.dot(x.astype(cd), w1.astype(cd), preferred_element_type=jnp.float32) + b1
    h = jnp.maximum(h, 0.0).astype(cd)
    h = jnp.dot(h, w2.astype(cd), preferred_element_type=jnp.float32) + b2
    h = jnp.maximum(h, 0.0).astype(cd)
    h = jnp.dot(h, w3.astype(cd), preferred_element_type=jnp.float32) + b3
    h = jnp.maximum(h, 0.0)
    z = jnp.dot(h, w4, preferred_element_type=jnp.float32) + b4
    return jax.nn.sigmoid(z)


# TODO(synk): training loop / sklearn metrics of the original class are host-side and
# out of scope for a forward-pass kernel.

if __name__ == "__main__":
    key = jax.random.PRNGKey(0)
    key, kx = jax.random.split(key)

    # Small tabular problem consistent with the module: 500 rows x 16 features.
    # (500 exercises row padding: 500 -> 512 = 2 grid steps of 256 rows.)
    N, F = 500, 16
    x = jax.random.normal(kx, (N, F), jnp.float32)
    params = init_params(key, num_features=F, hidden_layers=(64, 32, 16))

    fwd = jax.jit(alarmnet_forward)
    out = jax.block_until_ready(fwd(x, params))
    assert out.shape == (N, 1)

    # Tight check against a reference with identical bf16 operand rounding, and a
    # loose check against the full-f32 reference (bounds bf16 rounding error).
    ref_mixed = reference_forward_mixed(x, params)
    ref_f32 = reference_forward(x, params)
    assert jnp.allclose(out, ref_mixed, atol=1e-3, rtol=1e-3), \
        f"max |diff| vs mixed ref = {float(jnp.max(jnp.abs(out - ref_mixed)))}"
    assert jnp.allclose(out, ref_f32, atol=5e-2), \
        f"max |diff| vs f32 ref = {float(jnp.max(jnp.abs(out - ref_f32)))}"

    print("KERNEL_OK")
</pallas_src>

<mosaic_0001>
module attributes {stable_mosaic.version = 11 : i64} {
  func.func @_alarmnet_kernel(%arg0: i32, %arg1: memref<16x256xbf16, #tpu.memory_space<vmem>>, %arg2: memref<112x128xbf16, #tpu.memory_space<vmem>>, %arg3: memref<64x128xf32, #tpu.memory_space<vmem>>, %arg4: memref<1x256xf32, #tpu.memory_space<vmem>>) attributes {dimension_semantics = [#tpu.dimension_semantics<parallel>], iteration_bounds = array<i64: 2>, scalar_prefetch = 0 : i64, scratch_operands = 0 : i64, tpu.core_type = #tpu.core_type<tc>, window_params = [{transform_indices = @transform_0, window_bounds = array<i64: 16, 256>}, {pipeline_mode = #tpu.pipeline_mode<synchronous>, transform_indices = @transform_1, window_bounds = array<i64: 112, 128>}, {pipeline_mode = #tpu.pipeline_mode<synchronous>, transform_indices = @transform_2, window_bounds = array<i64: 64, 128>}, {transform_indices = @transform_3, window_bounds = array<i64: 1, 256>}]} {
    %c0 = arith.constant 0 : index
    %c0_0 = arith.constant 0 : index
    %0 = vector.load %arg1[%c0, %c0_0] : memref<16x256xbf16, #tpu.memory_space<vmem>>, vector<16x256xbf16>
    %c0_1 = arith.constant 0 : index
    %c0_2 = arith.constant 0 : index
    %1 = vector.load %arg2[%c0_1, %c0_2] : memref<112x128xbf16, #tpu.memory_space<vmem>>, vector<64x16xbf16>
    %c64 = arith.constant 64 : index
    %c0_3 = arith.constant 0 : index
    %2 = vector.load %arg2[%c64, %c0_3] : memref<112x128xbf16, #tpu.memory_space<vmem>>, vector<32x64xbf16>
    %c96 = arith.constant 96 : index
    %c0_4 = arith.constant 0 : index
    %3 = vector.load %arg2[%c96, %c0_4] : memref<112x128xbf16, #tpu.memory_space<vmem>>, vector<16x32xbf16>
    %c0_5 = arith.constant 0 : index
    %c0_6 = arith.constant 0 : index
    %4 = vector.load %arg3[%c0_5, %c0_6] : memref<64x128xf32, #tpu.memory_space<vmem>>, vector<64x1xf32>
    %c0_7 = arith.constant 0 : index
    %c1 = arith.constant 1 : index
    %5 = vector.load %arg3[%c0_7, %c1] : memref<64x128xf32, #tpu.memory_space<vmem>>, vector<32x1xf32>
    %c0_8 = arith.constant 0 : index
    %c2 = arith.constant 2 : index
    %6 = vector.load %arg3[%c0_8, %c2] : memref<64x128xf32, #tpu.memory_space<vmem>>, vector<16x1xf32>
    %c0_9 = arith.constant 0 : index
    %c3 = arith.constant 3 : index
    %7 = vector.load %arg3[%c0_9, %c3] : memref<64x128xf32, #tpu.memory_space<vmem>>, vector<1x1xf32>
    %c0_10 = arith.constant 0 : index
    %c4 = arith.constant 4 : index
    %8 = vector.load %arg3[%c0_10, %c4] : memref<64x128xf32, #tpu.memory_space<vmem>>, vector<16x1xf32>
    %cst = arith.constant dense<0.000000e+00> : vector<64x256xf32>
    %9 = tpu.matmul %1, %0, %cst {dimension_numbers = #tpu.dot_dimension_numbers<[1], [0], [0], [1], [0, 0, 1, 1], [], []>} : vector<64x16xbf16>, vector<16x256xbf16>, vector<64x256xf32> -> vector<64x256xf32>
    %10 = vector.broadcast %4 : vector<64x1xf32> to vector<64x256xf32>
    %11 = arith.addf %9, %10 : vector<64x256xf32>
    %cst_11 = arith.constant 0.000000e+00 : f32
    %12 = vector.broadcast %cst_11 : f32 to vector<64x256xf32>
    %13 = arith.maximumf %11, %12 : vector<64x256xf32>
    %14 = arith.truncf %13 : vector<64x256xf32> to vector<64x256xbf16>
    %cst_12 = arith.constant dense<0.000000e+00> : vector<32x256xf32>
    %15 = tpu.matmul %2, %14, %cst_12 {dimension_numbers = #tpu.dot_dimension_numbers<[1], [0], [0], [1], [0, 0, 1, 1], [], []>} : vector<32x64xbf16>, vector<64x256xbf16>, vector<32x256xf32> -> vector<32x256xf32>
    %16 = vector.broadcast %5 : vector<32x1xf32> to vector<32x256xf32>
    %17 = arith.addf %15, %16 : vector<32x256xf32>
    %cst_13 = arith.constant 0.000000e+00 : f32
    %18 = vector.broadcast %cst_13 : f32 to vector<32x256xf32>
    %19 = arith.maximumf %17, %18 : vector<32x256xf32>
    %20 = arith.truncf %19 : vector<32x256xf32> to vector<32x256xbf16>
    %cst_14 = arith.constant dense<0.000000e+00> : vector<16x256xf32>
    %21 = tpu.matmul %3, %20, %cst_14 {dimension_numbers = #tpu.dot_dimension_numbers<[1], [0], [0], [1], [0, 0, 1, 1], [], []>} : vector<16x32xbf16>, vector<32x256xbf16>, vector<16x256xf32> -> vector<16x256xf32>
    %22 = vector.broadcast %6 : vector<16x1xf32> to vector<16x256xf32>
    %23 = arith.addf %21, %22 : vector<16x256xf32>
    %cst_15 = arith.constant 0.000000e+00 : f32
    %24 = vector.broadcast %cst_15 : f32 to vector<16x256xf32>
    %25 = arith.maximumf %23, %24 : vector<16x256xf32>
    %26 = vector.broadcast %8 : vector<16x1xf32> to vector<16x256xf32>
    %27 = arith.mulf %26, %25 : vector<16x256xf32>
    %cst_16 = arith.constant dense<0.000000e+00> : vector<256xf32>
    %28 = vector.multi_reduction <add>, %27, %cst_16 [0] : vector<16x256xf32> to vector<256xf32>
    %29 = vector.shape_cast %28 : vector<256xf32> to vector<1x256xf32>
    %30 = vector.broadcast %7 : vector<1x1xf32> to vector<1x256xf32>
    %31 = arith.addf %29, %30 : vector<1x256xf32>
    %cst_17 = arith.constant 0.000000e+00 : f32
    %32 = vector.broadcast %cst_17 : f32 to vector<1x256xf32>
    %33 = arith.subf %32, %31 : vector<1x256xf32>
    %34 = math.exp %33 : vector<1x256xf32>
    %cst_18 = arith.constant 1.000000e+00 : f32
    %35 = vector.broadcast %cst_18 : f32 to vector<1x256xf32>
    %36 = arith.addf %35, %34 : vector<1x256xf32>
    %37 = tpu.reciprocal %36 : vector<1x256xf32> -> vector<1x256xf32>
    %c0_19 = arith.constant 0 : index
    %c0_20 = arith.constant 0 : index
    %38 = vector.load %arg4[%c0_19, %c0_20] : memref<1x256xf32, #tpu.memory_space<vmem>>, vector<1x256xf32>
    tpu.vector_store %arg4[%c0_19, %c0_20], %37 {strides = array<i32>} : memref<1x256xf32, #tpu.memory_space<vmem>>, vector<1x256xf32>,
    return
  }
  func.func @transform_0(%arg0: i32) -> (i32, i32) {
    %c0_i32 = arith.constant 0 : i32
    %c0_i32_0 = arith.constant 0 : i32
    return %c0_i32, %arg0 : i32, i32
  }
  func.func @transform_1(%arg0: i32) -> (i32, i32) {
    %c0_i32 = arith.constant 0 : i32
    %c0_i32_0 = arith.constant 0 : i32
    %c0_i32_1 = arith.constant 0 : i32
    return %c0_i32, %c0_i32_0 : i32, i32
  }
  func.func @transform_2(%arg0: i32) -> (i32, i32) {
    %c0_i32 = arith.constant 0 : i32
    %c0_i32_0 = arith.constant 0 : i32
    %c0_i32_1 = arith.constant 0 : i32
    return %c0_i32, %c0_i32_0 : i32, i32
  }
  func.func @transform_3(%arg0: i32) -> (i32, i32) {
    %c0_i32 = arith.constant 0 : i32
    %c0_i32_0 = arith.constant 0 : i32
    return %c0_i32, %arg0 : i32, i32
  }
}

</mosaic_0001>

<llo_original>
// kernel: alarmnet_forward.1
$region0: #{alarmnet_forward.1}
  #allocation0 [shape = 'u32[]', space=smem, size = 0x4, offset = 0x4, fixed_abs, tag = 'smem constant byte address 0x4 - core index']
  #allocation1 [shape = 'u32[144,128]{1,0:T(1,128)}', space=vmem, size = 0x12000, scoped, tag = 'internal scratch']
  %s0 = inlined_call_operand.vmem [shape: bf16[16,512], index: 0, kind: input, shape index: {}]
  %s1 = inlined_call_operand.vmem [shape: bf16[112,128], index: 1, kind: input, shape index: {}]
  %s2 = inlined_call_operand.vmem [shape: f32[64,128], index: 2, kind: input, shape index: {}]
  %s3 = inlined_call_operand.vmem [shape: f32[1,512], index: 3, kind: output, shape index: {}]
  %s4 = sld [smem:[#allocation0]]
  $region83: #{alarmnet_forward.1} parent=0
    _
  %s6 = ssub.s32 1, %s4
  %s7 = scalar_select 0, %s6, %s4
  $region1: #{alarmnet_forward.1} parent=0
    #allocation2 [shape = 'u8[16384]{0}', space=vmem, size = 0x4000, scoped, tag = 'input window, operand 0']
    loop: start=0, step=1, limit=4
    $region2: #{alarmnet_forward.1} parent=1 // loop_pre_header
      _
    $region3: #{alarmnet_forward.1} parent=1 // loop_header
      %s9 = sphi 0, %s13
      %p10 = scmp.ge.s32.totalorder %s9, 4
      %s19 = sphi 0, %s21
      %s22 = sphi 0, %s19
      %s23 = sphi 0, %s22
      %s39 = sphi 0, %s23
      %s43 = sphi 0, %s43
      %s45 = sphi 0, %s43
      %s46 = sphi 0, %s45
      %s60 = sphi 0, %s46
      %s64 = sphi 0, %s64
      %s66 = sphi 0, %s64
      %s67 = sphi 0, %s66
      %s81 = sphi 0, %s67
      %s87 = sphi 0, %s89
      %s90 = sphi 0, %s87
      %s91 = sphi 0, %s90
      %s107 = sphi 0, %s91
    $region4: #{alarmnet_forward.1} parent=1 // loop_header_branch
      %12 = sbr.rel (%p10) target = $region8
    $region5: #{alarmnet_forward.1} parent=1 // loop_body
      %s14 = ssub.s32 %s9, 1
      %s15 = ssub.s32 %s9, 2
      %s16 = sadd.s32 %s9, 1
      %s17 = ssub.s32 %s9, %s16
      %p18 = scmp.eq.s32.totalorder %s17, 0
      %s20 = sadd.s32 %s19, 1
      %s21 = scalar_select %p18, %s19, %s20
      %p24 = pneg %p18
      %p25 = scmp.eq.s32.totalorder %s9, 1
      %p26 = por %p24, %p25
      %p27 = scmp.ne.s32.totalorder %s19, %s22
      %p28 = scmp.eq.s32.totalorder %s9, 0
      %p29 = por %p27, %p28
      %p30 = scmp.ne.s32.totalorder %s19, %s22
      %p31 = scmp.eq.s32.totalorder %s14, 1
      %p32 = por %p30, %p31
      %p33 = scmp.ne.s32.totalorder %s22, %s23
      %p34 = scmp.eq.s32.totalorder %s14, 0
      %p35 = por %p33, %p34
      %p36 = scmp.ne.s32.totalorder %s22, %s23
      %p37 = scmp.eq.s32.totalorder %s15, 1
      %p38 = por %p36, %p37
      %p40 = scmp.ne.s32.totalorder %s23, %s39
      %p41 = scmp.eq.s32.totalorder %s15, 0
      %p42 = por %p40, %p41
      %s44 = sadd.s32 %s43, 1
      %p47 = scmp.eq.s32.totalorder %s9, 1
      %p48 = scmp.ne.s32.totalorder %s43, %s45
      %p49 = scmp.eq.s32.totalorder %s9, 0
      %p50 = por %p48, %p49
      %p51 = scmp.ne.s32.totalorder %s43, %s45
      %p52 = scmp.eq.s32.totalorder %s14, 1
      %p53 = por %p51, %p52
      %p54 = scmp.ne.s32.totalorder %s45, %s46
      %p55 = scmp.eq.s32.totalorder %s14, 0
      %p56 = por %p54, %p55
      %p57 = scmp.ne.s32.totalorder %s45, %s46
      %p58 = scmp.eq.s32.totalorder %s15, 1
      %p59 = por %p57, %p58
      %p61 = scmp.ne.s32.totalorder %s46, %s60
      %p62 = scmp.eq.s32.totalorder %s15, 0
      %p63 = por %p61, %p62
      %s65 = sadd.s32 %s64, 1
      %p68 = scmp.eq.s32.totalorder %s9, 1
      %p69 = scmp.ne.s32.totalorder %s64, %s66
      %p70 = scmp.eq.s32.totalorder %s9, 0
      %p71 = por %p69, %p70
      %p72 = scmp.ne.s32.totalorder %s64, %s66
      %p73 = scmp.eq.s32.totalorder %s14, 1
      %p74 = por %p72, %p73
      %p75 = scmp.ne.s32.totalorder %s66, %s67
      %p76 = scmp.eq.s32.totalorder %s14, 0
      %p77 = por %p75, %p76
      %p78 = scmp.ne.s32.totalorder %s66, %s67
      %p79 = scmp.eq.s32.totalorder %s15, 1
      %p80 = por %p78, %p79
      %p82 = scmp.ne.s32.totalorder %s67, %s81
      %p83 = scmp.eq.s32.totalorder %s15, 0
      %p84 = por %p82, %p83
      %s85 = ssub.s32 %s9, %s16
      %p86 = scmp.eq.s32.totalorder %s85, 0
      %s88 = sadd.s32 %s87, 1
      %s89 = scalar_select %p86, %s87, %s88
      %p92 = pneg %p86
      %p93 = scmp.eq.s32.totalorder %s9, 1
      %p94 = por %p92, %p93
      %p95 = scmp.ne.s32.totalorder %s87, %s90
      %p96 = scmp.eq.s32.totalorder %s9, 0
      %p97 = por %p95, %p96
      %p98 = scmp.ne.s32.totalorder %s87, %s90
      %p99 = scmp.eq.s32.totalorder %s14, 1
      %p100 = por %p98, %p99
      %p101 = scmp.ne.s32.totalorder %s90, %s91
      %p102 = scmp.eq.s32.totalorder %s14, 0
      %p103 = por %p101, %p102
      %p104 = scmp.ne.s32.totalorder %s90, %s91
      %p105 = scmp.eq.s32.totalorder %s15, 1
      %p106 = por %p104, %p105
      %p108 = scmp.ne.s32.totalorder %s91, %s107
      %p109 = scmp.eq.s32.totalorder %s15, 0
      %p110 = por %p108, %p109
      %p111 = scmp.le.s32.totalorder 1, %s9
      %p112 = scmp.lt.s32.totalorder %s9, 3
      %p113 = pnand %p111, %p112
      %p114 = pneg %p113
      // Predicated region
      $region9: #{alarmnet_forward.1} parent=5 // pred_check
        _
      $region10: #{alarmnet_forward.1} parent=5 // pred_check_branch
        %116 = sbr.rel (%p113) target = $region12
      $region11: #{alarmnet_forward.1} parent=5 // pred_region
        %s117 = ssub.s32 %s9, 1
        // Predicated region
        $region13: #{alarmnet_forward.1} parent=11 // pred_check
          %p118 = pneg %p56
        $region14: #{alarmnet_forward.1} parent=11 // pred_check_branch
          %120 = sbr.rel (%p118) target = $region16
        $region15: #{alarmnet_forward.1} parent=11 // pred_region
          _
        $region16: #{alarmnet_forward.1} parent=11 // pred_fallthru
          _
        // Predicated region
        $region17: #{alarmnet_forward.1} parent=11 // pred_check
          %p121 = pneg %p77
        $region18: #{alarmnet_forward.1} parent=11 // pred_check_branch
          %123 = sbr.rel (%p121) target = $region20
        $region19: #{alarmnet_forward.1} parent=11 // pred_region
          _
        $region20: #{alarmnet_forward.1} parent=11 // pred_fallthru
          _
      $region12: #{alarmnet_forward.1} parent=5 // pred_fallthru
        _
      %p124 = scmp.lt.s32.totalorder %s9, 2
      // Predicated region
      $region21: #{alarmnet_forward.1} parent=5 // pred_check
        %p125 = pneg %p124
      $region22: #{alarmnet_forward.1} parent=5 // pred_check_branch
        %127 = sbr.rel (%p125) target = $region24
      $region23: #{alarmnet_forward.1} parent=5 // pred_region
        // Predicated region
        $region25: #{alarmnet_forward.1} parent=23 // pred_check
          %p128 = pneg %p29
        $region26: #{alarmnet_forward.1} parent=23 // pred_check_branch
          %130 = sbr.rel (%p128) target = $region28
        $region27: #{alarmnet_forward.1} parent=23 // pred_region
          %s131 = sand.u32 %s19, 1
          %s132 = sand.u32 %s19, 1
          %s133 = smul.addr %s132, 16
          %s134 = scalar_lea.vmem [#allocation2], %s133
          %s135 = smul.u32 2, %s9
          %s136 = smul.addr %s135, 4
          %s137 = scalar_lea.vmem %s0, %s136
          // Predicated region
          $region29: #{alarmnet_forward.1} parent=27 // pred_check
            _
          $region30: #{alarmnet_forward.1} parent=27 // pred_check_branch
            %139 = sbr.rel (0) target = $region32
          $region31: #{alarmnet_forward.1} parent=27 // pred_region
            // Predicated region
            $region33: #{alarmnet_forward.1} parent=31 // pred_check
              _
            $region34: #{alarmnet_forward.1} parent=31 // pred_check_branch
              %141 = sbr.rel (0) target = $region36
            $region35: #{alarmnet_forward.1} parent=31 // pred_region
              // Predicated region
              $region48: #{alarmnet_forward.1} parent=35 // pred_check
                _
              $region49: #{alarmnet_forward.1} parent=35 // pred_check_branch
                %158 = sbr.rel (0) target = $region51
              $region50: #{alarmnet_forward.1} parent=35 // pred_region
                loop: start=0, step=1, limit=1
                $region52: #{alarmnet_forward.1} parent=50 // loop_pre_header
                  _
                $region53: #{alarmnet_forward.1} parent=50 // loop_header
                  %s160 = sphi 0, %s164
                  %p161 = scmp.ge.s32.totalorder %s160, 1
                  %s165 = sphi %s137, %s137
                  %s166 = sphi %s134, %s134
                $region54: #{alarmnet_forward.1} parent=50 // loop_header_branch
                  %163 = sbr.rel (%p161) target = $region58
                $region55: #{alarmnet_forward.1} parent=50 // loop_body
                  %v167 = vld [vmem:[%s165] sm:$0xff]
                  %168 = vst [vmem:[%s166] sm:$0xff] %v167
                  %v169 = vld [vmem:[%s165 + $0x10] sm:$0xff]
                  %170 = vst [vmem:[%s166 + $0x8] sm:$0xff] %v169
                $region56: #{alarmnet_forward.1} parent=50 // loop_footer
                  %s164 = sadd.s32 1, %s160
                $region57: #{alarmnet_forward.1} parent=50 // loop_footer_branch
                  %159 = sbr.rel target = $region53
                $region58: #{alarmnet_forward.1} parent=50 // loop_exit
                  _
              $region51: #{alarmnet_forward.1} parent=35 // pred_fallthru
                _
              // Predicated region
              $region59: #{alarmnet_forward.1} parent=35 // pred_check
                _
              $region60: #{alarmnet_forward.1} parent=35 // pred_check_branch
                %172 = sbr.rel target = $region62
              $region61: #{alarmnet_forward.1} parent=35 // pred_region
                _
              $region62: #{alarmnet_forward.1} parent=35 // pred_fallthru
                _
            $region36: #{alarmnet_forward.1} parent=31 // pred_fallthru
              _
            // Predicated region
            $region37: #{alarmnet_forward.1} parent=31 // pred_check
              _
            $region38: #{alarmnet_forward.1} parent=31 // pred_check_branch
              %143 = sbr.rel target = $region40
            $region39: #{alarmnet_forward.1} parent=31 // pred_region
              loop: start=0, step=1, limit=1
              $region41: #{alarmnet_forward.1} parent=39 // loop_pre_header
                _
              $region42: #{alarmnet_forward.1} parent=39 // loop_header
                %s146 = sphi 0, %s150
                %p147 = scmp.ge.s32.totalorder %s146, 1
                %s151 = sphi %s137, %s137
                %s152 = sphi %s134, %s134
              $region43: #{alarmnet_forward.1} parent=39 // loop_header_branch
                %149 = sbr.rel (%p147) target = $region47
              $region44: #{alarmnet_forward.1} parent=39 // loop_body
                %v153 = vld [vmem:[%s151] sm:$0xff]
                %154 = vst [vmem:[%s152] sm:$0xff] %v153
                %v155 = vld [vmem:[%s151 + $0x10] sm:$0xff]
                %156 = vst [vmem:[%s152 + $0x8] sm:$0xff] %v155
              $region45: #{alarmnet_forward.1} parent=39 // loop_footer
                %s150 = sadd.s32 1, %s146
              $region46: #{alarmnet_forward.1} parent=39 // loop_footer_branch
                %145 = sbr.rel target = $region42
              $region47: #{alarmnet_forward.1} parent=39 // loop_exit
                _
            $region40: #{alarmnet_forward.1} parent=31 // pred_fallthru
              _
          $region32: #{alarmnet_forward.1} parent=27 // pred_fallthru
            _
          %173 = vnop
        $region28: #{alarmnet_forward.1} parent=23 // pred_fallthru
          _
      $region24: #{alarmnet_forward.1} parent=5 // pred_fallthru
        _
      %p174 = scmp.le.s32.totalorder 1, %s9
      %p175 = scmp.lt.s32.totalorder %s9, 3
      %p176 = pnand %p174, %p175
      %p177 = pneg %p176
      // Predicated region
      $region63: #{alarmnet_forward.1} parent=5 // pred_check
        _
      $region64: #{alarmnet_forward.1} parent=5 // pred_check_branch
        %179 = sbr.rel (%p176) target = $region66
      $region65: #{alarmnet_forward.1} parent=5 // pred_region
        %s180 = ssub.s32 %s9, 1
        %s181 = sand.u32 %s22, 1
        %s182 = sand.u32 %s22, 1
        %s183 = smul.addr %s182, 16
        %s184 = scalar_lea.vmem [#allocation2], %s183
        // Predicated region
        $region67: #{alarmnet_forward.1} parent=65 // pred_check
          %p185 = pneg %p35
        $region68: #{alarmnet_forward.1} parent=65 // pred_check_branch
          %187 = sbr.rel (%p185) target = $region70
        $region69: #{alarmnet_forward.1} parent=65 // pred_region
          _
        $region70: #{alarmnet_forward.1} parent=65 // pred_fallthru
          _
        %s188 = sand.u32 %s22, 1
        %s189 = sand.u32 %s22, 1
        %s190 = smul.addr %s189, 16
        %s191 = scalar_lea.vmem [#allocation2], %s190
        %p192 = pneg %p35
        %p193 = pneg %p32
        %p194 = pneg %p56
        %p195 = pneg %p53
        %p196 = pneg %p77
        %p197 = pneg %p74
        %p198 = pneg %p103
        %p199 = pneg %p100
        %s200 = smul.u32 2, %s14
        %p201 = scmp.lt.s32.totalorder %s200, 3
        %s202 = scalar_select %p201, %s200, 3
        %s203 = scalar_lea.vmem %s3, %s202
        %s204 = smul.u32 2, %s14
        %s205 = smul.u32 2, %s14
        %p206 = scmp.lt.s32.totalorder %s205, 3
        %s207 = scalar_select %p206, %s205, 3
        %s208 = scalar_lea.vmem %s3, %s207
        %s209 = smul.u32 2, %s14
        %v211 = vld [vmem:[%s184] sm:$0xff]
        %v212 = vld [vmem:[%s184 + $0x8] sm:$0xff]
        %v213 = vld [vmem:[%s1] sm:$0xf]
        %v214 = vld [vmem:[%s1 + $0x4] sm:$0xf]
        %v215 = vld [vmem:[%s1 + $0x8] sm:$0xf]
        %v216 = vld [vmem:[%s1 + $0xc] sm:$0xf]
        %v217 = vld [vmem:[%s1 + $0x10] sm:$0xf]
        %v218 = vld [vmem:[%s1 + $0x14] sm:$0xf]
        %v219 = vld [vmem:[%s1 + $0x18] sm:$0xf]
        %v220 = vld [vmem:[%s1 + $0x1c] sm:$0xf]
        %v221 = vld [vmem:[%s1 + $0x20] sm:$0xf]
        %v222 = vld [vmem:[%s1 + $0x24] sm:$0xf]
        %v223 = vld [vmem:[%s1 + $0x28] sm:$0xf]
        %v224 = vld [vmem:[%s1 + $0x2c] sm:$0xf]
        %v225 = vld [vmem:[%s1 + $0x30] sm:$0xf]
        %v226 = vld [vmem:[%s1 + $0x34] sm:$0xf]
        %v227 = vld [vmem:[%s2] sm:$0xff]
        %v228 = vld [vmem:[%s2 + $0x8] sm:$0xff]
        %v229 = vld [vmem:[%s2 + $0x10] sm:$0xff]
        %v230 = vld [vmem:[%s2 + $0x18] sm:$0xff]
        %v231 = vld [vmem:[%s2 + $0x20] sm:$0xff]
        %v232 = vld [vmem:[%s2 + $0x28] sm:$0xff]
        %v233 = vld [vmem:[%s2 + $0x30] sm:$0xff]
        %v234 = vld [vmem:[%s2 + $0x38] sm:$0xff]
        %v235 = vld [vmem:[%s2] sm:$0xff]
        %v236 = vld [vmem:[%s2 + $0x8] sm:$0xff]
        %v237 = vld [vmem:[%s2 + $0x10] sm:$0xff]
        %v238 = vld [vmem:[%s2 + $0x18] sm:$0xff]
        %v239 = vld [vmem:[%s2] sm:$0x1]
        %241 = vset.pattern.permute.xlu0 0
        %242 = vperm.xlu0 %241, %v227
        %v243 = vpop.permute.xlu0 %242
        %246 = vset.pattern.permute.xlu0 0
        %247 = vperm.xlu0 %246, %v228
        %v248 = vpop.permute.xlu0 %247
        %251 = vset.pattern.permute.xlu0 0
        %252 = vperm.xlu0 %251, %v229
        %v253 = vpop.permute.xlu0 %252
        %256 = vset.pattern.permute.xlu0 0
        %257 = vperm.xlu0 %256, %v230
        %v258 = vpop.permute.xlu0 %257
        %261 = vset.pattern.permute.xlu0 0
        %262 = vperm.xlu0 %261, %v231
        %v263 = vpop.permute.xlu0 %262
        %266 = vset.pattern.permute.xlu0 0
        %267 = vperm.xlu0 %266, %v232
        %v268 = vpop.permute.xlu0 %267
        %271 = vset.pattern.permute.xlu0 0
        %272 = vperm.xlu0 %271, %v233
        %v273 = vpop.permute.xlu0 %272
        %276 = vset.pattern.permute.xlu0 0
        %277 = vperm.xlu0 %276, %v234
        %v278 = vpop.permute.xlu0 %277
        %v288 = vunpack.c.l.b16 %v213
        %v289 = vunpack.c.l.b16 %v214
        %v290 = vunpack.c.l.b16 %v215
        %v291 = vunpack.c.l.b16 %v216
        %v292 = vunpack.c.l.b16 %v217
        %v293 = vunpack.c.l.b16 %v218
        %v294 = vunpack.c.l.b16 %v219
        %v295 = vunpack.c.l.b16 %v220
        %v296 = vpack.c.b16 %v289, %v288
        %v297 = vpack.c.b16 %v291, %v290
        %v298 = vpack.c.b16 %v293, %v292
        %v299 = vpack.c.b16 %v295, %v294
        %v302 = vunpack.c.l.b16 %v211
        %v303 = vunpack.c.h.b16 %v211
        %v304 = vunpack.c.l.b16 %v212
        %v305 = vunpack.c.h.b16 %v212
        %v306 = vpack.c.b16 %v304, %v302
        %v307 = vpack.c.b16 %v305, %v303
        %vm310 = vcmask 130048
        %v312 = vsel %vm310, %v296, 0
        %v315 = vsel %vm310, %v297, 0
        %v318 = vsel %vm310, %v298, 0
        %v321 = vsel %vm310, %v299, 0
        %323 = vmatprep.subr.bf16.mxu0 %v307
        %324 = vmatpush1.bf16.msra.mxu0 %v306
        %325 = vmatprep.subr.bf16.mxu0 0
        %326 = vmatpush1.bf16.msra.mxu0 0
        %327 = vmatprep.subr.bf16.mxu0 0
        %328 = vmatpush1.bf16.msra.mxu0 0
        %329 = vmatprep.subr.bf16.mxu0 0
        %330 = vmatpush1.bf16.msra.mxu0 0
        %331 = vmatprep.subr.bf16.mxu0 0
        %332 = vmatpush1.bf16.msra.mxu0 0
        %333 = vmatprep.subr.bf16.mxu0 0
        %334 = vmatpush1.bf16.msra.mxu0 0
        %335 = vmatprep.subr.bf16.mxu0 0
        %336 = vmatpush1.bf16.msra.mxu0 0
        %337 = vmatprep.subr.bf16.mxu0 0
        %338 = vmatpush1.bf16.msra.mxu0 0
        %339 = vmatprep.subr.bf16.mxu0 0
        %340 = vmatpush1.bf16.msra.mxu0 0
        %341 = vmatprep.subr.bf16.mxu0 0
        %342 = vmatpush1.bf16.msra.mxu0 0
        %343 = vmatprep.subr.bf16.mxu0 0
        %344 = vmatpush1.bf16.msra.mxu0 0
        %345 = vmatprep.subr.bf16.mxu0 0
        %346 = vmatpush1.bf16.msra.mxu0 0
        %347 = vmatprep.subr.bf16.mxu0 0
        %348 = vmatpush1.bf16.msra.mxu0 0
        %349 = vmatprep.subr.bf16.mxu0 0
        %350 = vmatpush1.bf16.msra.mxu0 0
        %351 = vmatprep.subr.bf16.mxu0 0
        %352 = vmatpush1.bf16.msra.mxu0 0
        %353 = vmatprep.subr.bf16.mxu0 0
        %354 = vmatpush1.bf16.msra.mxu0 0
        %355 = vmatprep.mubr.bf16.mxu0 0
        %356 = vmatmul.mubr.bf16.gmra.mrb[0].mxu0 %v312
        %v357 = vpop.f32.mrb[0].mxu0
        %v358 = vadd.f32 %v243, %v357
        %v359 = vpop.f32.mrb[0].mxu0
        %v360 = vadd.f32 %v243, %v359
        %v361 = vpop.f32.mrb[0].mxu0
        %v362 = vadd.f32 %v248, %v361
        %v363 = vpop.f32.mrb[0].mxu0
        %v364 = vadd.f32 %v248, %v363
        %365 = vmatprep.mubr.bf16.mxu0 0
        %366 = vmatmul.mubr.bf16.gmra.mrb[0].mxu0 %v315
        %v367 = vpop.f32.mrb[0].mxu0
        %v368 = vadd.f32 %v253, %v367
        %v369 = vpop.f32.mrb[0].mxu0
        %v370 = vadd.f32 %v253, %v369
        %v371 = vpop.f32.mrb[0].mxu0
        %v372 = vadd.f32 %v258, %v371
        %v373 = vpop.f32.mrb[0].mxu0
        %v374 = vadd.f32 %v258, %v373
        %375 = vmatprep.mubr.bf16.mxu0 0
        %376 = vmatmul.mubr.bf16.gmra.mrb[0].mxu0 %v318
        %v377 = vpop.f32.mrb[0].mxu0
        %v378 = vadd.f32 %v263, %v377
        %v379 = vpop.f32.mrb[0].mxu0
        %v380 = vadd.f32 %v263, %v379
        %v381 = vpop.f32.mrb[0].mxu0
        %v382 = vadd.f32 %v268, %v381
        %v383 = vpop.f32.mrb[0].mxu0
        %v384 = vadd.f32 %v268, %v383
        %385 = vmatprep.mubr.bf16.mxu0 0
        %386 = vmatmul.mubr.bf16.gmra.mrb[0].mxu0 %v321
        %v387 = vpop.f32.mrb[0].mxu0
        %v388 = vadd.f32 %v273, %v387
        %v389 = vpop.f32.mrb[0].mxu0
        %v390 = vadd.f32 %v273, %v389
        %v391 = vpop.f32.mrb[0].mxu0
        %v392 = vadd.f32 %v278, %v391
        %v393 = vpop.f32.mrb[0].mxu0
        %v394 = vadd.f32 %v278, %v393
        %395 = vdwg.mxu0
        %v396 = vmax.f32 %v358, 0.0
        %v397 = vmax.f32 %v360, 0.0
        %v398 = vmax.f32 %v362, 0.0
        %v399 = vmax.f32 %v364, 0.0
        %v400 = vmax.f32 %v368, 0.0
        %v401 = vmax.f32 %v370, 0.0
        %v402 = vmax.f32 %v372, 0.0
        %v403 = vmax.f32 %v374, 0.0
        %v404 = vmax.f32 %v378, 0.0
        %v405 = vmax.f32 %v380, 0.0
        %v406 = vmax.f32 %v382, 0.0
        %v407 = vmax.f32 %v384, 0.0
        %v408 = vmax.f32 %v388, 0.0
        %v409 = vmax.f32 %v390, 0.0
        %v410 = vmax.f32 %v392, 0.0
        %v411 = vmax.f32 %v394, 0.0
        %v412 = vpack.c.bf16 %v398, %v396
        %v413 = vpack.c.bf16 %v399, %v397
        %v414 = vpack.c.bf16 %v402, %v400
        %v415 = vpack.c.bf16 %v403, %v401
        %v416 = vpack.c.bf16 %v406, %v404
        %v417 = vpack.c.bf16 %v407, %v405
        %v418 = vpack.c.bf16 %v410, %v408
        %v419 = vpack.c.bf16 %v411, %v409
        %421 = vset.pattern.permute.xlu0 1
        %422 = vperm.xlu0 %421, %v235
        %v423 = vpop.permute.xlu0 %422
        %426 = vset.pattern.permute.xlu0 1
        %427 = vperm.xlu0 %426, %v236
        %v428 = vpop.permute.xlu0 %427
        %431 = vset.pattern.permute.xlu0 1
        %432 = vperm.xlu0 %431, %v237
        %v433 = vpop.permute.xlu0 %432
        %436 = vset.pattern.permute.xlu0 1
        %437 = vperm.xlu0 %436, %v238
        %v438 = vpop.permute.xlu0 %437
        %v444 = vunpack.c.l.b16 %v221
        %v445 = vunpack.c.l.b16 %v222
        %v446 = vunpack.c.l.b16 %v223
        %v447 = vunpack.c.l.b16 %v224
        %v448 = vpack.c.b16 %v445, %v444
        %v449 = vpack.c.b16 %v447, %v446
        %vm450 = vcmask 523264
        %v452 = vsel %vm450, %v448, 0
        %v455 = vsel %vm450, %v449, 0
        %457 = vmatprep.subr.bf16.mxu0 %v413
        %458 = vmatpush1.bf16.msra.mxu0 %v412
        %459 = vmatprep.subr.bf16.mxu0 %v415
        %460 = vmatpush1.bf16.msra.mxu0 %v414
        %461 = vmatprep.subr.bf16.mxu0 %v417
        %462 = vmatpush1.bf16.msra.mxu0 %v416
        %463 = vmatprep.subr.bf16.mxu0 %v419
        %464 = vmatpush1.bf16.msra.mxu0 %v418
        %465 = vmatprep.subr.bf16.mxu0 0
        %466 = vmatpush1.bf16.msra.mxu0 0
        %467 = vmatprep.subr.bf16.mxu0 0
        %468 = vmatpush1.bf16.msra.mxu0 0
        %469 = vmatprep.subr.bf16.mxu0 0
        %470 = vmatpush1.bf16.msra.mxu0 0
        %471 = vmatprep.subr.bf16.mxu0 0
        %472 = vmatpush1.bf16.msra.mxu0 0
        %473 = vmatprep.subr.bf16.mxu0 0
        %474 = vmatpush1.bf16.msra.mxu0 0
        %475 = vmatprep.subr.bf16.mxu0 0
        %476 = vmatpush1.bf16.msra.mxu0 0
        %477 = vmatprep.subr.bf16.mxu0 0
        %478 = vmatpush1.bf16.msra.mxu0 0
        %479 = vmatprep.subr.bf16.mxu0 0
        %480 = vmatpush1.bf16.msra.mxu0 0
        %481 = vmatprep.subr.bf16.mxu0 0
        %482 = vmatpush1.bf16.msra.mxu0 0
        %483 = vmatprep.subr.bf16.mxu0 0
        %484 = vmatpush1.bf16.msra.mxu0 0
        %485 = vmatprep.subr.bf16.mxu0 0
        %486 = vmatpush1.bf16.msra.mxu0 0
        %487 = vmatprep.subr.bf16.mxu0 0
        %488 = vmatpush1.bf16.msra.mxu0 0
        %489 = vmatprep.mubr.bf16.mxu0 0
        %490 = vmatmul.mubr.bf16.gmra.mrb[0].mxu0 %v452
        %v491 = vpop.f32.mrb[0].mxu0
        %v492 = vadd.f32 %v423, %v491
        %v493 = vpop.f32.mrb[0].mxu0
        %v494 = vadd.f32 %v423, %v493
        %v495 = vpop.f32.mrb[0].mxu0
        %v496 = vadd.f32 %v428, %v495
        %v497 = vpop.f32.mrb[0].mxu0
        %v498 = vadd.f32 %v428, %v497
        %499 = vmatprep.mubr.bf16.mxu0 0
        %500 = vmatmul.mubr.bf16.gmra.mrb[0].mxu0 %v455
        %v501 = vpop.f32.mrb[0].mxu0
        %v502 = vadd.f32 %v433, %v501
        %v503 = vpop.f32.mrb[0].mxu0
        %v504 = vadd.f32 %v433, %v503
        %v505 = vpop.f32.mrb[0].mxu0
        %v506 = vadd.f32 %v438, %v505
        %v507 = vpop.f32.mrb[0].mxu0
        %v508 = vadd.f32 %v438, %v507
        %509 = vdwg.mxu0
        %v510 = vmax.f32 %v492, 0.0
        %v511 = vmax.f32 %v494, 0.0
        %v512 = vmax.f32 %v496, 0.0
        %v513 = vmax.f32 %v498, 0.0
        %v514 = vmax.f32 %v502, 0.0
        %v515 = vmax.f32 %v504, 0.0
        %v516 = vmax.f32 %v506, 0.0
        %v517 = vmax.f32 %v508, 0.0
        %v518 = vpack.c.bf16 %v512, %v510
        %v519 = vpack.c.bf16 %v513, %v511
        %v520 = vpack.c.bf16 %v516, %v514
        %v521 = vpack.c.bf16 %v517, %v515
        %522 = vset.pattern.permute.xlu0 2
        %523 = vperm.xlu0 %522, %v235
        %v524 = vpop.permute.xlu0 %523
        %526 = vset.pattern.permute.xlu0 2
        %527 = vperm.xlu0 %526, %v236
        %v528 = vpop.permute.xlu0 %527
        %v532 = vunpack.c.l.b16 %v225
        %v533 = vunpack.c.l.b16 %v226
        %v534 = vpack.c.b16 %v533, %v532
        %vm535 = vcmask 261120
        %v537 = vsel %vm535, %v534, 0
        %539 = vmatprep.subr.bf16.mxu0 %v519
        %540 = vmatpush1.bf16.msra.mxu0 %v518
        %541 = vmatprep.subr.bf16.mxu0 %v521
        %542 = vmatpush1.bf16.msra.mxu0 %v520
        %543 = vmatprep.subr.bf16.mxu0 0
        %544 = vmatpush1.bf16.msra.mxu0 0
        %545 = vmatprep.subr.bf16.mxu0 0
        %546 = vmatpush1.bf16.msra.mxu0 0
        %547 = vmatprep.subr.bf16.mxu0 0
        %548 = vmatpush1.bf16.msra.mxu0 0
        %549 = vmatprep.subr.bf16.mxu0 0
        %550 = vmatpush1.bf16.msra.mxu0 0
        %551 = vmatprep.subr.bf16.mxu0 0
        %552 = vmatpush1.bf16.msra.mxu0 0
        %553 = vmatprep.subr.bf16.mxu0 0
        %554 = vmatpush1.bf16.msra.mxu0 0
        %555 = vmatprep.subr.bf16.mxu0 0
        %556 = vmatpush1.bf16.msra.mxu0 0
        %557 = vmatprep.subr.bf16.mxu0 0
        %558 = vmatpush1.bf16.msra.mxu0 0
        %559 = vmatprep.subr.bf16.mxu0 0
        %560 = vmatpush1.bf16.msra.mxu0 0
        %561 = vmatprep.subr.bf16.mxu0 0
        %562 = vmatpush1.bf16.msra.mxu0 0
        %563 = vmatprep.subr.bf16.mxu0 0
        %564 = vmatpush1.bf16.msra.mxu0 0
        %565 = vmatprep.subr.bf16.mxu0 0
        %566 = vmatpush1.bf16.msra.mxu0 0
        %567 = vmatprep.subr.bf16.mxu0 0
        %568 = vmatpush1.bf16.msra.mxu0 0
        %569 = vmatprep.subr.bf16.mxu0 0
        %570 = vmatpush1.bf16.msra.mxu0 0
        %571 = vmatprep.mubr.bf16.mxu0 0
        %572 = vmatmul.mubr.bf16.gmra.mrb[0].mxu0 %v537
        %v573 = vpop.f32.mrb[0].mxu0
        %v574 = vadd.f32 %v524, %v573
        %v575 = vpop.f32.mrb[0].mxu0
        %v576 = vadd.f32 %v524, %v575
        %v577 = vpop.f32.mrb[0].mxu0
        %v578 = vadd.f32 %v528, %v577
        %v579 = vpop.f32.mrb[0].mxu0
        %v580 = vadd.f32 %v528, %v579
        %581 = vdwg.mxu0
        %v582 = vmax.f32 %v574, 0.0
        %v583 = vmax.f32 %v576, 0.0
        %v584 = vmax.f32 %v578, 0.0
        %v585 = vmax.f32 %v580, 0.0
        %586 = vset.pattern.permute.xlu0 4
        %587 = vperm.xlu0 %586, %v235
        %v588 = vpop.permute.xlu0 %587
        %590 = vset.pattern.permute.xlu0 4
        %591 = vperm.xlu0 %590, %v236
        %v592 = vpop.permute.xlu0 %591
        %v594 = vmul.f32 %v588, %v582
        %v595 = vmul.f32 %v588, %v583
        %v596 = vmul.f32 %v592, %v584
        %v597 = vmul.f32 %v592, %v585
        %v598 = vadd.f32 %v594, %v596
        %v599 = vrot.slane %v598, 4
        %v600 = vadd.f32 %v598, %v599
        %v601 = vrot.slane %v600, 2
        %v602 = vadd.f32 %v600, %v601
        %v603 = vrot.slane %v602, 1
        %v604 = vadd.f32 %v602, %v603
        %v605 = vadd.f32 %v595, %v597
        %v606 = vrot.slane %v605, 4
        %v607 = vadd.f32 %v605, %v606
        %v608 = vrot.slane %v607, 2
        %v609 = vadd.f32 %v607, %v608
        %v610 = vrot.slane %v609, 1
        %v611 = vadd.f32 %v609, %v610
        %613 = vset.pattern.permute.xlu0 3
        %614 = vperm.xlu0 %613, %v239
        %v615 = vpop.permute.xlu0 %614
        %v617 = vadd.f32 %v604, %v615
        %v618 = vadd.f32 %v611, %v615
        %v619 = vsub.f32 0.0, %v617
        %v620 = vsub.f32 0.0, %v618
        %v621 = vmul.f32 %v619, 1.442695
        %v622 = vpow.pop %v621
        %v623 = vmul.f32 %v620, 1.442695
        %v624 = vpow.pop %v623
        %v625 = vadd.f32 %v622, 1.0
        %v626 = vadd.f32 %v624, 1.0
        %v627 = vrcp.pop %v625
        %v628 = vrcp.pop %v626
        %v631 = vcombine.low %v627, %v628
        %v633 = vunpack.c.l.s4 1966171168
        %v634 = vunpack.c.0.s8 %v633
        %v635 = vlaneseq
        %v636 = vshrl.u32 %v635, 7
        %v637 = vsub.s32 %v634, %v636
        %v638 = vrot.slane %v631, %v637
        %v640 = vunpack.c.l.s4 1966171168
        %v641 = vunpack.c.0.s8 %v640
        %v642 = vlaneseq
        %v643 = vshrl.u32 %v642, 7
        %v644 = vsub.s32 %v641, %v643
        %v645 = vrot.slane %v638, %v644
        %v647 = vlaneseq
        %vm648 = vcmp.ge.s32.totalorder %v647, 0
        %vm649 = vcmp.lt.s32.totalorder %v647, 256
        %vm650 = vmand %vm648, %vm649
        %651 = vst.msk [vmem:[%s208] sm:$0x3] %vm650, %v645
        %s652 = smul.u32 2, %s14
        %p653 = scmp.lt.s32.totalorder %s652, 3
        %s654 = scalar_select %p653, %s652, 3
        %s655 = scalar_lea.vmem %s3, %s654
        // Predicated region
        $region71: #{alarmnet_forward.1} parent=65 // pred_check
          %p656 = pneg %p100
        $region72: #{alarmnet_forward.1} parent=65 // pred_check_branch
          %658 = sbr.rel (%p656) target = $region74
        $region73: #{alarmnet_forward.1} parent=65 // pred_region
          %s659 = smul.u32 2, %s14
        $region74: #{alarmnet_forward.1} parent=65 // pred_fallthru
          _
      $region66: #{alarmnet_forward.1} parent=5 // pred_fallthru
        _
      %p660 = scmp.le.s32.totalorder 2, %s9
      // Predicated region
      $region75: #{alarmnet_forward.1} parent=5 // pred_check
        %p661 = pneg %p660
      $region76: #{alarmnet_forward.1} parent=5 // pred_check_branch
        %663 = sbr.rel (%p661) target = $region78
      $region77: #{alarmnet_forward.1} parent=5 // pred_region
        %s664 = ssub.s32 %s9, 2
        // Predicated region
        $region79: #{alarmnet_forward.1} parent=77 // pred_check
          %p665 = pneg %p106
        $region80: #{alarmnet_forward.1} parent=77 // pred_check_branch
          %667 = sbr.rel (%p665) target = $region82
        $region81: #{alarmnet_forward.1} parent=77 // pred_region
          %s668 = smul.u32 2, %s15
          %p669 = scmp.lt.s32.totalorder %s668, 3
          %s670 = scalar_select %p669, %s668, 3
          %s671 = scalar_lea.vmem %s3, %s670
        $region82: #{alarmnet_forward.1} parent=77 // pred_fallthru
          _
      $region78: #{alarmnet_forward.1} parent=5 // pred_fallthru
        _
    $region6: #{alarmnet_forward.1} parent=1 // loop_footer
      %s13 = sadd.s32 1, %s9
    $region7: #{alarmnet_forward.1} parent=1 // loop_footer_branch
      %8 = sbr.rel target = $region3
    $region8: #{alarmnet_forward.1} parent=1 // loop_exit
      _

</llo_original>
